<compile_context>
chip_gen: v7x
topology: tpu7x:2x2x1
jax: 0.10.0
libtpu: 0.0.40
codegen_flags: <defaults>
</compile_context>

<pallas_src>
import jax
import jax.numpy as jnp
from jax import lax
from jax.experimental import pallas as pl
from jax.experimental.pallas import tpu as pltpu

K = 5                    # kernel size
PAD = 2                  # ConvTranspose2d padding
EP = K - 1 - PAD         # equivalent forward-correlation halo = 2


def _convt_sigmoid_kernel(x_ref, w_ref, b_ref, o_ref):
    """x_ref : (N, H, W)  VMEM  input planes
       w_ref : (K*K,)     SMEM  spatially flipped kernel taps
       b_ref : (1,)       SMEM  bias
       o_ref : (N, H, W)  VMEM  sigmoid(conv_transpose(x) + bias)"""
    N, H, W = x_ref.shape
    x = x_ref[...]

    # ---- value-level halo padding (vregs only; no scratch, no stores) ------
    zc = jnp.zeros((N, H, EP), jnp.float32)
    xw = jnp.concatenate([zc, x, zc], axis=2)             # (N, H, W+2*EP)
    zr = jnp.zeros((N, EP, W + 2 * EP), jnp.float32)
    xp = jnp.concatenate([zr, xw, zr], axis=1)            # (N, H+2*EP, W+2*EP)

    # ---- hoist all 25 scalar tap reads out of the unrolled MAC loop --------
    w = [w_ref[t] for t in range(K * K)]

    # ---- 25-tap correlation: kw lane slices hoisted (5), kh sublane inner --
    acc = jnp.zeros((N, H, W), jnp.float32)
    for kw in range(K):
        xk = xp[:, :, kw:kw + W]                          # (N, H+2*EP, W)
        for kh in range(K):
            acc = acc + xk[:, kh:kh + H, :] * w[kh * K + kw]

    z = acc + b_ref[0]
    o_ref[...] = 1.0 / (1.0 + jnp.exp(-z))                # exp on EUP slot


@jax.jit
def conv_transpose_sigmoid(x, w_flat, bias):
    """x: (N, 1, H, W) f32; w_flat: (K*K,) spatially flipped taps (f32);
    bias: (1,) f32. Returns sigmoid(ConvTranspose2d(x)) with shape (N,1,H,W)."""
    N, C, H, W = x.shape
    assert C == 1 and w_flat.shape == (K * K,) and bias.shape == (1,)

    cost = pl.CostEstimate(
        flops=2 * K * K * N * H * W,
        transcendentals=N * H * W,
        bytes_accessed=4 * (2 * N * H * W + K * K + 1),
    )

    y = pl.pallas_call(
        _convt_sigmoid_kernel,
        out_shape=jax.ShapeDtypeStruct((N, H, W), jnp.float32),
        in_specs=[
            pl.BlockSpec(memory_space=pltpu.MemorySpace.VMEM),
            pl.BlockSpec(memory_space=pltpu.MemorySpace.SMEM),
            pl.BlockSpec(memory_space=pltpu.MemorySpace.SMEM),
        ],
        out_specs=pl.BlockSpec(memory_space=pltpu.MemorySpace.VMEM),
        cost_estimate=cost,
    )(x[:, 0], w_flat, bias)

    # Degenerate-dim expand: contiguous reshape inside this jit (no copy).
    return y[:, None]


def _reference(x, weight, bias):
    """Independent JAX reference: lax.conv_transpose does its own kernel flip
    and channel swap (transpose_kernel=True), matching PyTorch
    ConvTranspose2d(k=5, stride=1, padding=2) with weight layout (Cin,Cout,kH,kW)."""
    y = lax.conv_transpose(
        x, weight, strides=(1, 1),
        padding=[(EP, EP), (EP, EP)],
        dimension_numbers=("NCHW", "IOHW", "NCHW"),
        transpose_kernel=True,
        precision=lax.Precision.HIGHEST)
    return jax.nn.sigmoid(y + bias[None, :, None, None])


if __name__ == "__main__":
    key = jax.random.PRNGKey(0)
    kx, kwt, kb = jax.random.split(key, 3)

    N, C, H, W = 2, 1, 16, 16
    x = jax.random.normal(kx, (N, C, H, W), dtype=jnp.float32)

    # Deterministic ConvTranspose2d parameters (PyTorch layout [C_in, C_out, kH, kW]).
    fan_in = C * K * K
    bound = 1.0 / (fan_in ** 0.5)
    weight = jax.random.uniform(kwt, (1, 1, K, K), jnp.float32, -bound, bound)
    bias = jax.random.uniform(kb, (1,), jnp.float32, -bound, bound)

    # One-time parameter prep, hoisted out of the per-call path.
    w_flat = weight[0, 0, ::-1, ::-1].reshape(K * K)

    out = jax.block_until_ready(conv_transpose_sigmoid(x, w_flat, bias))

    ref = _reference(x, weight, bias)
    assert out.shape == (N, C, H, W)
    assert jnp.allclose(out, ref, atol=1e-5, rtol=1e-5), "mismatch vs reference"

    print("KERNEL_OK")
</pallas_src>

<mosaic_0001>
module attributes {stable_mosaic.version = 11 : i64} {
  func.func @_convt_sigmoid_kernel(%arg0: memref<2x16x16xf32, #tpu.memory_space<vmem>>, %arg1: memref<25xf32, #tpu.memory_space<smem>>, %arg2: memref<1xf32, #tpu.memory_space<smem>>, %arg3: memref<2x16x16xf32, #tpu.memory_space<vmem>>) attributes {dimension_semantics = [], scalar_prefetch = 0 : i64, scratch_operands = 0 : i64, tpu.core_type = #tpu.core_type<tc>} {
    %c0 = arith.constant 0 : index
    %c0_0 = arith.constant 0 : index
    %c0_1 = arith.constant 0 : index
    %0 = vector.load %arg0[%c0, %c0_0, %c0_1] : memref<2x16x16xf32, #tpu.memory_space<vmem>>, vector<2x16x16xf32>
    %cst = arith.constant 0.000000e+00 : f32
    %1 = vector.broadcast %cst : f32 to vector<2x16x2xf32>
    %2 = tpu.concatenate %1, %0, %1 in 2 : vector<2x16x2xf32>, vector<2x16x16xf32>, vector<2x16x2xf32> -> vector<2x16x20xf32>
    %cst_2 = arith.constant 0.000000e+00 : f32
    %3 = vector.broadcast %cst_2 : f32 to vector<2x2x20xf32>
    %4 = tpu.concatenate %3, %2, %3 in 1 : vector<2x2x20xf32>, vector<2x16x20xf32>, vector<2x2x20xf32> -> vector<2x20x20xf32>
    %c0_3 = arith.constant 0 : index
    %5 = memref.load %arg1[%c0_3] : memref<25xf32, #tpu.memory_space<smem>>
    %c1 = arith.constant 1 : index
    %6 = memref.load %arg1[%c1] : memref<25xf32, #tpu.memory_space<smem>>
    %c2 = arith.constant 2 : index
    %7 = memref.load %arg1[%c2] : memref<25xf32, #tpu.memory_space<smem>>
    %c3 = arith.constant 3 : index
    %8 = memref.load %arg1[%c3] : memref<25xf32, #tpu.memory_space<smem>>
    %c4 = arith.constant 4 : index
    %9 = memref.load %arg1[%c4] : memref<25xf32, #tpu.memory_space<smem>>
    %c5 = arith.constant 5 : index
    %10 = memref.load %arg1[%c5] : memref<25xf32, #tpu.memory_space<smem>>
    %c6 = arith.constant 6 : index
    %11 = memref.load %arg1[%c6] : memref<25xf32, #tpu.memory_space<smem>>
    %c7 = arith.constant 7 : index
    %12 = memref.load %arg1[%c7] : memref<25xf32, #tpu.memory_space<smem>>
    %c8 = arith.constant 8 : index
    %13 = memref.load %arg1[%c8] : memref<25xf32, #tpu.memory_space<smem>>
    %c9 = arith.constant 9 : index
    %14 = memref.load %arg1[%c9] : memref<25xf32, #tpu.memory_space<smem>>
    %c10 = arith.constant 10 : index
    %15 = memref.load %arg1[%c10] : memref<25xf32, #tpu.memory_space<smem>>
    %c11 = arith.constant 11 : index
    %16 = memref.load %arg1[%c11] : memref<25xf32, #tpu.memory_space<smem>>
    %c12 = arith.constant 12 : index
    %17 = memref.load %arg1[%c12] : memref<25xf32, #tpu.memory_space<smem>>
    %c13 = arith.constant 13 : index
    %18 = memref.load %arg1[%c13] : memref<25xf32, #tpu.memory_space<smem>>
    %c14 = arith.constant 14 : index
    %19 = memref.load %arg1[%c14] : memref<25xf32, #tpu.memory_space<smem>>
    %c15 = arith.constant 15 : index
    %20 = memref.load %arg1[%c15] : memref<25xf32, #tpu.memory_space<smem>>
    %c16 = arith.constant 16 : index
    %21 = memref.load %arg1[%c16] : memref<25xf32, #tpu.memory_space<smem>>
    %c17 = arith.constant 17 : index
    %22 = memref.load %arg1[%c17] : memref<25xf32, #tpu.memory_space<smem>>
    %c18 = arith.constant 18 : index
    %23 = memref.load %arg1[%c18] : memref<25xf32, #tpu.memory_space<smem>>
    %c19 = arith.constant 19 : index
    %24 = memref.load %arg1[%c19] : memref<25xf32, #tpu.memory_space<smem>>
    %c20 = arith.constant 20 : index
    %25 = memref.load %arg1[%c20] : memref<25xf32, #tpu.memory_space<smem>>
    %c21 = arith.constant 21 : index
    %26 = memref.load %arg1[%c21] : memref<25xf32, #tpu.memory_space<smem>>
    %c22 = arith.constant 22 : index
    %27 = memref.load %arg1[%c22] : memref<25xf32, #tpu.memory_space<smem>>
    %c23 = arith.constant 23 : index
    %28 = memref.load %arg1[%c23] : memref<25xf32, #tpu.memory_space<smem>>
    %c24 = arith.constant 24 : index
    %29 = memref.load %arg1[%c24] : memref<25xf32, #tpu.memory_space<smem>>
    %cst_4 = arith.constant 0.000000e+00 : f32
    %30 = vector.broadcast %cst_4 : f32 to vector<2x16x16xf32>
    %31 = vector.extract_strided_slice %4 {offsets = [0, 0, 0], sizes = [2, 20, 16], strides = [1, 1, 1]} : vector<2x20x20xf32> to vector<2x20x16xf32>
    %32 = vector.extract_strided_slice %31 {offsets = [0, 0, 0], sizes = [2, 16, 16], strides = [1, 1, 1]} : vector<2x20x16xf32> to vector<2x16x16xf32>
    %33 = vector.broadcast %5 : f32 to vector<2x16x16xf32>
    %34 = arith.mulf %32, %33 : vector<2x16x16xf32>
    %35 = arith.addf %30, %34 : vector<2x16x16xf32>
    %36 = vector.extract_strided_slice %31 {offsets = [0, 1, 0], sizes = [2, 16, 16], strides = [1, 1, 1]} : vector<2x20x16xf32> to vector<2x16x16xf32>
    %37 = vector.broadcast %10 : f32 to vector<2x16x16xf32>
    %38 = arith.mulf %36, %37 : vector<2x16x16xf32>
    %39 = arith.addf %35, %38 : vector<2x16x16xf32>
    %40 = vector.extract_strided_slice %31 {offsets = [0, 2, 0], sizes = [2, 16, 16], strides = [1, 1, 1]} : vector<2x20x16xf32> to vector<2x16x16xf32>
    %41 = vector.broadcast %15 : f32 to vector<2x16x16xf32>
    %42 = arith.mulf %40, %41 : vector<2x16x16xf32>
    %43 = arith.addf %39, %42 : vector<2x16x16xf32>
    %44 = vector.extract_strided_slice %31 {offsets = [0, 3, 0], sizes = [2, 16, 16], strides = [1, 1, 1]} : vector<2x20x16xf32> to vector<2x16x16xf32>
    %45 = vector.broadcast %20 : f32 to vector<2x16x16xf32>
    %46 = arith.mulf %44, %45 : vector<2x16x16xf32>
    %47 = arith.addf %43, %46 : vector<2x16x16xf32>
    %48 = vector.extract_strided_slice %31 {offsets = [0, 4, 0], sizes = [2, 16, 16], strides = [1, 1, 1]} : vector<2x20x16xf32> to vector<2x16x16xf32>
    %49 = vector.broadcast %25 : f32 to vector<2x16x16xf32>
    %50 = arith.mulf %48, %49 : vector<2x16x16xf32>
    %51 = arith.addf %47, %50 : vector<2x16x16xf32>
    %52 = vector.extract_strided_slice %4 {offsets = [0, 0, 1], sizes = [2, 20, 16], strides = [1, 1, 1]} : vector<2x20x20xf32> to vector<2x20x16xf32>
    %53 = vector.extract_strided_slice %52 {offsets = [0, 0, 0], sizes = [2, 16, 16], strides = [1, 1, 1]} : vector<2x20x16xf32> to vector<2x16x16xf32>
    %54 = vector.broadcast %6 : f32 to vector<2x16x16xf32>
    %55 = arith.mulf %53, %54 : vector<2x16x16xf32>
    %56 = arith.addf %51, %55 : vector<2x16x16xf32>
    %57 = vector.extract_strided_slice %52 {offsets = [0, 1, 0], sizes = [2, 16, 16], strides = [1, 1, 1]} : vector<2x20x16xf32> to vector<2x16x16xf32>
    %58 = vector.broadcast %11 : f32 to vector<2x16x16xf32>
    %59 = arith.mulf %57, %58 : vector<2x16x16xf32>
    %60 = arith.addf %56, %59 : vector<2x16x16xf32>
    %61 = vector.extract_strided_slice %52 {offsets = [0, 2, 0], sizes = [2, 16, 16], strides = [1, 1, 1]} : vector<2x20x16xf32> to vector<2x16x16xf32>
    %62 = vector.broadcast %16 : f32 to vector<2x16x16xf32>
    %63 = arith.mulf %61, %62 : vector<2x16x16xf32>
    %64 = arith.addf %60, %63 : vector<2x16x16xf32>
    %65 = vector.extract_strided_slice %52 {offsets = [0, 3, 0], sizes = [2, 16, 16], strides = [1, 1, 1]} : vector<2x20x16xf32> to vector<2x16x16xf32>
    %66 = vector.broadcast %21 : f32 to vector<2x16x16xf32>
    %67 = arith.mulf %65, %66 : vector<2x16x16xf32>
    %68 = arith.addf %64, %67 : vector<2x16x16xf32>
    %69 = vector.extract_strided_slice %52 {offsets = [0, 4, 0], sizes = [2, 16, 16], strides = [1, 1, 1]} : vector<2x20x16xf32> to vector<2x16x16xf32>
    %70 = vector.broadcast %26 : f32 to vector<2x16x16xf32>
    %71 = arith.mulf %69, %70 : vector<2x16x16xf32>
    %72 = arith.addf %68, %71 : vector<2x16x16xf32>
    %73 = vector.extract_strided_slice %4 {offsets = [0, 0, 2], sizes = [2, 20, 16], strides = [1, 1, 1]} : vector<2x20x20xf32> to vector<2x20x16xf32>
    %74 = vector.extract_strided_slice %73 {offsets = [0, 0, 0], sizes = [2, 16, 16], strides = [1, 1, 1]} : vector<2x20x16xf32> to vector<2x16x16xf32>
    %75 = vector.broadcast %7 : f32 to vector<2x16x16xf32>
    %76 = arith.mulf %74, %75 : vector<2x16x16xf32>
    %77 = arith.addf %72, %76 : vector<2x16x16xf32>
    %78 = vector.extract_strided_slice %73 {offsets = [0, 1, 0], sizes = [2, 16, 16], strides = [1, 1, 1]} : vector<2x20x16xf32> to vector<2x16x16xf32>
    %79 = vector.broadcast %12 : f32 to vector<2x16x16xf32>
    %80 = arith.mulf %78, %79 : vector<2x16x16xf32>
    %81 = arith.addf %77, %80 : vector<2x16x16xf32>
    %82 = vector.extract_strided_slice %73 {offsets = [0, 2, 0], sizes = [2, 16, 16], strides = [1, 1, 1]} : vector<2x20x16xf32> to vector<2x16x16xf32>
    %83 = vector.broadcast %17 : f32 to vector<2x16x16xf32>
    %84 = arith.mulf %82, %83 : vector<2x16x16xf32>
    %85 = arith.addf %81, %84 : vector<2x16x16xf32>
    %86 = vector.extract_strided_slice %73 {offsets = [0, 3, 0], sizes = [2, 16, 16], strides = [1, 1, 1]} : vector<2x20x16xf32> to vector<2x16x16xf32>
    %87 = vector.broadcast %22 : f32 to vector<2x16x16xf32>
    %88 = arith.mulf %86, %87 : vector<2x16x16xf32>
    %89 = arith.addf %85, %88 : vector<2x16x16xf32>
    %90 = vector.extract_strided_slice %73 {offsets = [0, 4, 0], sizes = [2, 16, 16], strides = [1, 1, 1]} : vector<2x20x16xf32> to vector<2x16x16xf32>
    %91 = vector.broadcast %27 : f32 to vector<2x16x16xf32>
    %92 = arith.mulf %90, %91 : vector<2x16x16xf32>
    %93 = arith.addf %89, %92 : vector<2x16x16xf32>
    %94 = vector.extract_strided_slice %4 {offsets = [0, 0, 3], sizes = [2, 20, 16], strides = [1, 1, 1]} : vector<2x20x20xf32> to vector<2x20x16xf32>
    %95 = vector.extract_strided_slice %94 {offsets = [0, 0, 0], sizes = [2, 16, 16], strides = [1, 1, 1]} : vector<2x20x16xf32> to vector<2x16x16xf32>
    %96 = vector.broadcast %8 : f32 to vector<2x16x16xf32>
    %97 = arith.mulf %95, %96 : vector<2x16x16xf32>
    %98 = arith.addf %93, %97 : vector<2x16x16xf32>
    %99 = vector.extract_strided_slice %94 {offsets = [0, 1, 0], sizes = [2, 16, 16], strides = [1, 1, 1]} : vector<2x20x16xf32> to vector<2x16x16xf32>
    %100 = vector.broadcast %13 : f32 to vector<2x16x16xf32>
    %101 = arith.mulf %99, %100 : vector<2x16x16xf32>
    %102 = arith.addf %98, %101 : vector<2x16x16xf32>
    %103 = vector.extract_strided_slice %94 {offsets = [0, 2, 0], sizes = [2, 16, 16], strides = [1, 1, 1]} : vector<2x20x16xf32> to vector<2x16x16xf32>
    %104 = vector.broadcast %18 : f32 to vector<2x16x16xf32>
    %105 = arith.mulf %103, %104 : vector<2x16x16xf32>
    %106 = arith.addf %102, %105 : vector<2x16x16xf32>
    %107 = vector.extract_strided_slice %94 {offsets = [0, 3, 0], sizes = [2, 16, 16], strides = [1, 1, 1]} : vector<2x20x16xf32> to vector<2x16x16xf32>
    %108 = vector.broadcast %23 : f32 to vector<2x16x16xf32>
    %109 = arith.mulf %107, %108 : vector<2x16x16xf32>
    %110 = arith.addf %106, %109 : vector<2x16x16xf32>
    %111 = vector.extract_strided_slice %94 {offsets = [0, 4, 0], sizes = [2, 16, 16], strides = [1, 1, 1]} : vector<2x20x16xf32> to vector<2x16x16xf32>
    %112 = vector.broadcast %28 : f32 to vector<2x16x16xf32>
    %113 = arith.mulf %111, %112 : vector<2x16x16xf32>
    %114 = arith.addf %110, %113 : vector<2x16x16xf32>
    %115 = vector.extract_strided_slice %4 {offsets = [0, 0, 4], sizes = [2, 20, 16], strides = [1, 1, 1]} : vector<2x20x20xf32> to vector<2x20x16xf32>
    %116 = vector.extract_strided_slice %115 {offsets = [0, 0, 0], sizes = [2, 16, 16], strides = [1, 1, 1]} : vector<2x20x16xf32> to vector<2x16x16xf32>
    %117 = vector.broadcast %9 : f32 to vector<2x16x16xf32>
    %118 = arith.mulf %116, %117 : vector<2x16x16xf32>
    %119 = arith.addf %114, %118 : vector<2x16x16xf32>
    %120 = vector.extract_strided_slice %115 {offsets = [0, 1, 0], sizes = [2, 16, 16], strides = [1, 1, 1]} : vector<2x20x16xf32> to vector<2x16x16xf32>
    %121 = vector.broadcast %14 : f32 to vector<2x16x16xf32>
    %122 = arith.mulf %120, %121 : vector<2x16x16xf32>
    %123 = arith.addf %119, %122 : vector<2x16x16xf32>
    %124 = vector.extract_strided_slice %115 {offsets = [0, 2, 0], sizes = [2, 16, 16], strides = [1, 1, 1]} : vector<2x20x16xf32> to vector<2x16x16xf32>
    %125 = vector.broadcast %19 : f32 to vector<2x16x16xf32>
    %126 = arith.mulf %124, %125 : vector<2x16x16xf32>
    %127 = arith.addf %123, %126 : vector<2x16x16xf32>
    %128 = vector.extract_strided_slice %115 {offsets = [0, 3, 0], sizes = [2, 16, 16], strides = [1, 1, 1]} : vector<2x20x16xf32> to vector<2x16x16xf32>
    %129 = vector.broadcast %24 : f32 to vector<2x16x16xf32>
    %130 = arith.mulf %128, %129 : vector<2x16x16xf32>
    %131 = arith.addf %127, %130 : vector<2x16x16xf32>
    %132 = vector.extract_strided_slice %115 {offsets = [0, 4, 0], sizes = [2, 16, 16], strides = [1, 1, 1]} : vector<2x20x16xf32> to vector<2x16x16xf32>
    %133 = vector.broadcast %29 : f32 to vector<2x16x16xf32>
    %134 = arith.mulf %132, %133 : vector<2x16x16xf32>
    %135 = arith.addf %131, %134 : vector<2x16x16xf32>
    %c0_5 = arith.constant 0 : index
    %136 = memref.load %arg2[%c0_5] : memref<1xf32, #tpu.memory_space<smem>>
    %137 = vector.broadcast %136 : f32 to vector<2x16x16xf32>
    %138 = arith.addf %135, %137 : vector<2x16x16xf32>
    %cst_6 = arith.constant 0.000000e+00 : f32
    %139 = vector.broadcast %cst_6 : f32 to vector<2x16x16xf32>
    %140 = arith.subf %139, %138 : vector<2x16x16xf32>
    %141 = math.exp %140 : vector<2x16x16xf32>
    %cst_7 = arith.constant 1.000000e+00 : f32
    %142 = vector.broadcast %cst_7 : f32 to vector<2x16x16xf32>
    %143 = arith.addf %142, %141 : vector<2x16x16xf32>
    %cst_8 = arith.constant 1.000000e+00 : f32
    %144 = vector.broadcast %cst_8 : f32 to vector<2x16x16xf32>
    %145 = arith.divf %144, %143 : vector<2x16x16xf32>
    %c0_9 = arith.constant 0 : index
    %c0_10 = arith.constant 0 : index
    %c0_11 = arith.constant 0 : index
    %146 = vector.load %arg3[%c0_9, %c0_10, %c0_11] : memref<2x16x16xf32, #tpu.memory_space<vmem>>, vector<2x16x16xf32>
    tpu.vector_store %arg3[%c0_9, %c0_10, %c0_11], %145 {strides = array<i32>} : memref<2x16x16xf32, #tpu.memory_space<vmem>>, vector<2x16x16xf32>,
    return
  }
}

</mosaic_0001>

<llo_original>
// kernel: conv_transpose_sigmoid.1
$region0: #{conv_transpose_sigmoid.1}
  #allocation0 [shape = 'u32[]', space=smem, size = 0x4, offset = 0x4, fixed_abs, tag = 'smem constant byte address 0x4 - core index']
  #allocation1 [shape = 'u32[144,128]{1,0:T(1,128)}', space=vmem, size = 0x12000, scoped, tag = 'internal scratch']
  #allocation2 [shape = 'f32[1]{0:T(128)S(6)}', space=smem, size = 0x200, scoped, tag = 'scoped memory for conv_transpose_sigmoid.1']
  %s0 = inlined_call_operand.hbm [shape: f32[2,16,16], index: 0, kind: input, shape index: {}]
  %s1 = inlined_call_operand.vmem [shape: f32[25], index: 1, kind: input, shape index: {}]
  %s2 = inlined_call_operand.<no memory space> [shape: f32[1], index: 2, kind: input, shape index: {}]
  %s3 = inlined_call_operand.hbm [shape: f32[2,16,16], index: 3, kind: output, shape index: {}]
  %s4 = sld [smem:[#allocation0]]
  $region30: #{conv_transpose_sigmoid.1} parent=0
    _
  %s6 = ssub.s32 1, %s4
  %s7 = scalar_select 0, %s6, %s4
  %8 = sst [smem:[#allocation2]] %s2
  $region1: #{conv_transpose_sigmoid.1} parent=0
    #allocation3 [shape = 'u8[16384]{0}', space=vmem, size = 0x4000, scoped, tag = 'input window, operand 0, single buffered']
    #allocation4 [shape = 's32[1]{0}', space=sflag, size = 0x4, scoped, tag = 'scoped memory for conv_transpose_sigmoid.1']
    #allocation5 [shape = 's32[1]{0}', space=sflag, size = 0x4, scoped, tag = 'scoped memory for conv_transpose_sigmoid.1']
    #allocation6 [shape = 's32[1]{0}', space=sflag, size = 0x4, scoped, tag = 'scoped memory for conv_transpose_sigmoid.1']
    #allocation7 [shape = 'u8[512]{0}', space=smem, size = 0x200, scoped, tag = 'input window, operand 1, single buffered']
    #allocation8 [shape = 'u8[16384]{0}', space=vmem, size = 0x4000, scoped, tag = 'output window, operand 0, single buffered']
    %9 = vsyncpa [#allocation4], 0
    %10 = vsyncpa [#allocation6], 0
    %11 = vsyncpa [#allocation5], 0
    // Predicated region
    $region2: #{conv_transpose_sigmoid.1} parent=1 // pred_check
      _
    $region3: #{conv_transpose_sigmoid.1} parent=1 // pred_check_branch
      %13 = sbr.rel (0) target = $region5
    $region4: #{conv_transpose_sigmoid.1} parent=1 // pred_region
      %s15 = ssub.s32 512, 512
      %16 = vsyncadd [#allocation4], %s15
      %s17 = sshll.u32 [#allocation3], 4
      %s18 = int_to_ptr.vmem [resolvable:$true] %s17
      %23 = dma.hbm_to_vmem [thread:$0]  %s0, 512, %s18, [#allocation4], 128, 128, 8
    $region5: #{conv_transpose_sigmoid.1} parent=1 // pred_fallthru
      _
    // Predicated region
    $region6: #{conv_transpose_sigmoid.1} parent=1 // pred_check
      _
    $region7: #{conv_transpose_sigmoid.1} parent=1 // pred_check_branch
      %25 = sbr.rel (0) target = $region9
    $region8: #{conv_transpose_sigmoid.1} parent=1 // pred_region
      %s27 = ssub.s32 16, 16
      %28 = vsyncadd [#allocation6], %s27
      %s30 = sshll.u32 %s1, 4
      %s31 = int_to_ptr.vmem [resolvable:$true] %s30
      %33 = dma.vmem_to_smem %s31, 16, [#allocation7], [#allocation6]
    $region9: #{conv_transpose_sigmoid.1} parent=1 // pred_fallthru
      _
    // Predicated region
    $region10: #{conv_transpose_sigmoid.1} parent=1 // pred_check
      _
    $region11: #{conv_transpose_sigmoid.1} parent=1 // pred_check_branch
      %35 = sbr.rel (0) target = $region13
    $region12: #{conv_transpose_sigmoid.1} parent=1 // pred_region
      _
    $region13: #{conv_transpose_sigmoid.1} parent=1 // pred_fallthru
      _
    // Predicated region
    $region14: #{conv_transpose_sigmoid.1} parent=1 // pred_check
      _
    $region15: #{conv_transpose_sigmoid.1} parent=1 // pred_check_branch
      %37 = sbr.rel (0) target = $region17
    $region16: #{conv_transpose_sigmoid.1} parent=1 // pred_region
      %38 = dma.done [#allocation4], 512
    $region17: #{conv_transpose_sigmoid.1} parent=1 // pred_fallthru
      _
    // Predicated region
    $region18: #{conv_transpose_sigmoid.1} parent=1 // pred_check
      _
    $region19: #{conv_transpose_sigmoid.1} parent=1 // pred_check_branch
      %40 = sbr.rel (0) target = $region21
    $region20: #{conv_transpose_sigmoid.1} parent=1 // pred_region
      %41 = dma.done [#allocation6], 16
    $region21: #{conv_transpose_sigmoid.1} parent=1 // pred_fallthru
      _
    %42 = sfence
    %v43 = vld [vmem:[#allocation3] sm:$0xff]
    %v44 = vld [vmem:[#allocation3 + $0x8] sm:$0xff]
    %v45 = vld [vmem:[#allocation3 + $0x10] sm:$0xff]
    %v46 = vld [vmem:[#allocation3 + $0x18] sm:$0xff]
    %51 = vrot.lane.b32.xlu0 %v43, 2
    %v52 = vpop.permute.xlu0 %51
    %53 = vrot.lane.b32.xlu0 %v44, 2
    %v54 = vpop.permute.xlu0 %53
    %55 = vrot.lane.b32.xlu0 %v45, 2
    %v56 = vpop.permute.xlu0 %55
    %57 = vrot.lane.b32.xlu0 %v46, 2
    %v58 = vpop.permute.xlu0 %57
    %vm63 = vcmask 15360
    %v64 = vsel %vm63, 0.0, %v52
    %v65 = vsel %vm63, 0.0, %v54
    %v66 = vsel %vm63, 0.0, %v56
    %v67 = vsel %vm63, 0.0, %v58
    %vm68 = vcmask 146432
    %v69 = vsel %vm68, %v64, 0.0
    %v70 = vsel %vm68, %v65, 0.0
    %v71 = vsel %vm68, %v66, 0.0
    %v72 = vsel %vm68, %v67, 0.0
    %vm77 = vcmask 1041408
    %v78 = vrot.slane %v69, 6
    %v79 = vrot.slane %v70, 6
    %v80 = vsel %vm77, %v78, %v79
    %v81 = vrot.slane %v71, 6
    %v82 = vrot.slane %v72, 6
    %v83 = vsel %vm77, %v81, %v82
    %v90 = vsel %vm77, 0.0, %v78
    %v91 = vsel %vm77, 0.0, %v81
    %v92 = vsel %vm77, %v79, 0.0
    %v93 = vsel %vm77, %v82, 0.0
    %s94 = sld [smem:[#allocation7]]
    %s95 = sld [smem:[#allocation7 + $0x1]]
    %s96 = sld [smem:[#allocation7 + $0x2]]
    %s97 = sld [smem:[#allocation7 + $0x3]]
    %s98 = sld [smem:[#allocation7 + $0x4]]
    %s99 = sld [smem:[#allocation7 + $0x5]]
    %s100 = sld [smem:[#allocation7 + $0x6]]
    %s101 = sld [smem:[#allocation7 + $0x7]]
    %s102 = sld [smem:[#allocation7 + $0x8]]
    %s103 = sld [smem:[#allocation7 + $0x9]]
    %s104 = sld [smem:[#allocation7 + $0xa]]
    %s105 = sld [smem:[#allocation7 + $0xb]]
    %s106 = sld [smem:[#allocation7 + $0xc]]
    %s107 = sld [smem:[#allocation7 + $0xd]]
    %s108 = sld [smem:[#allocation7 + $0xe]]
    %s109 = sld [smem:[#allocation7 + $0xf]]
    %s110 = sld [smem:[#allocation7 + $0x10]]
    %s111 = sld [smem:[#allocation7 + $0x11]]
    %s112 = sld [smem:[#allocation7 + $0x12]]
    %s113 = sld [smem:[#allocation7 + $0x13]]
    %s114 = sld [smem:[#allocation7 + $0x14]]
    %s115 = sld [smem:[#allocation7 + $0x15]]
    %s116 = sld [smem:[#allocation7 + $0x16]]
    %s117 = sld [smem:[#allocation7 + $0x17]]
    %s118 = sld [smem:[#allocation7 + $0x18]]
    %v119 = vstv %s94
    %v120 = vmul.f32 %v90, %v119
    %v121 = vmul.f32 %v80, %v119
    %v122 = vmul.f32 %v91, %v119
    %v123 = vmul.f32 %v83, %v119
    %v124 = vadd.f32 %v120, 0.0
    %v125 = vadd.f32 %v121, 0.0
    %v126 = vadd.f32 %v122, 0.0
    %v127 = vadd.f32 %v123, 0.0
    %v128 = vstv %s99
    %v129 = vmul.f32 %v90, %v128
    %v130 = vmul.f32 %v80, %v128
    %v131 = vmul.f32 %v92, %v128
    %v132 = vmul.f32 %v91, %v128
    %v133 = vmul.f32 %v83, %v128
    %v134 = vmul.f32 %v93, %v128
    %vm141 = vcmask 1046528
    %v142 = vrot.slane %v129, 1
    %v143 = vrot.slane %v130, 1
    %v144 = vsel %vm141, %v142, %v143
    %v145 = vrot.slane %v131, 1
    %v146 = vsel %vm141, %v143, %v145
    %v147 = vrot.slane %v132, 1
    %v148 = vrot.slane %v133, 1
    %v149 = vsel %vm141, %v147, %v148
    %v150 = vrot.slane %v134, 1
    %v151 = vsel %vm141, %v148, %v150
    %v156 = vadd.f32 %v124, %v144
    %v157 = vadd.f32 %v125, %v146
    %v158 = vadd.f32 %v126, %v149
    %v159 = vadd.f32 %v127, %v151
    %v160 = vstv %s104
    %v161 = vmul.f32 %v90, %v160
    %v162 = vmul.f32 %v80, %v160
    %v163 = vmul.f32 %v92, %v160
    %v164 = vmul.f32 %v91, %v160
    %v165 = vmul.f32 %v83, %v160
    %v166 = vmul.f32 %v93, %v160
    %vm173 = vcmask 1045504
    %v174 = vrot.slane %v161, 2
    %v175 = vrot.slane %v162, 2
    %v176 = vsel %vm173, %v174, %v175
    %v177 = vrot.slane %v163, 2
    %v178 = vsel %vm173, %v175, %v177
    %v179 = vrot.slane %v164, 2
    %v180 = vrot.slane %v165, 2
    %v181 = vsel %vm173, %v179, %v180
    %v182 = vrot.slane %v166, 2
    %v183 = vsel %vm173, %v180, %v182
    %v188 = vadd.f32 %v156, %v176
    %v189 = vadd.f32 %v157, %v178
    %v190 = vadd.f32 %v158, %v181
    %v191 = vadd.f32 %v159, %v183
    %v192 = vstv %s109
    %v193 = vmul.f32 %v90, %v192
    %v194 = vmul.f32 %v80, %v192
    %v195 = vmul.f32 %v92, %v192
    %v196 = vmul.f32 %v91, %v192
    %v197 = vmul.f32 %v83, %v192
    %v198 = vmul.f32 %v93, %v192
    %vm205 = vcmask 1044480
    %v206 = vrot.slane %v193, 3
    %v207 = vrot.slane %v194, 3
    %v208 = vsel %vm205, %v206, %v207
    %v209 = vrot.slane %v195, 3
    %v210 = vsel %vm205, %v207, %v209
    %v211 = vrot.slane %v196, 3
    %v212 = vrot.slane %v197, 3
    %v213 = vsel %vm205, %v211, %v212
    %v214 = vrot.slane %v198, 3
    %v215 = vsel %vm205, %v212, %v214
    %v220 = vadd.f32 %v188, %v208
    %v221 = vadd.f32 %v189, %v210
    %v222 = vadd.f32 %v190, %v213
    %v223 = vadd.f32 %v191, %v215
    %v224 = vstv %s114
    %v225 = vmul.f32 %v90, %v224
    %v226 = vmul.f32 %v80, %v224
    %v227 = vmul.f32 %v92, %v224
    %v228 = vmul.f32 %v91, %v224
    %v229 = vmul.f32 %v83, %v224
    %v230 = vmul.f32 %v93, %v224
    %vm237 = vcmask 1043456
    %v238 = vrot.slane %v225, 4
    %v239 = vrot.slane %v226, 4
    %v240 = vsel %vm237, %v238, %v239
    %v241 = vrot.slane %v227, 4
    %v242 = vsel %vm237, %v239, %v241
    %v243 = vrot.slane %v228, 4
    %v244 = vrot.slane %v229, 4
    %v245 = vsel %vm237, %v243, %v244
    %v246 = vrot.slane %v230, 4
    %v247 = vsel %vm237, %v244, %v246
    %v252 = vadd.f32 %v220, %v240
    %v253 = vadd.f32 %v221, %v242
    %v254 = vadd.f32 %v222, %v245
    %v255 = vadd.f32 %v223, %v247
    %v256 = vstv %s95
    %v257 = vmul.f32 %v90, %v256
    %v258 = vmul.f32 %v80, %v256
    %v259 = vmul.f32 %v91, %v256
    %v260 = vmul.f32 %v83, %v256
    %265 = vrot.lane.b32.xlu0 %v257, 127
    %v266 = vpop.permute.xlu0 %265
    %267 = vrot.lane.b32.xlu0 %v258, 127
    %v268 = vpop.permute.xlu0 %267
    %269 = vrot.lane.b32.xlu0 %v259, 127
    %v270 = vpop.permute.xlu0 %269
    %271 = vrot.lane.b32.xlu0 %v260, 127
    %v272 = vpop.permute.xlu0 %271
    %v277 = vadd.f32 %v252, %v266
    %v278 = vadd.f32 %v253, %v268
    %v279 = vadd.f32 %v254, %v270
    %v280 = vadd.f32 %v255, %v272
    %v281 = vstv %s100
    %v282 = vmul.f32 %v90, %v281
    %v283 = vmul.f32 %v80, %v281
    %v284 = vmul.f32 %v92, %v281
    %v285 = vmul.f32 %v91, %v281
    %v286 = vmul.f32 %v83, %v281
    %v287 = vmul.f32 %v93, %v281
    %v294 = vrot.slane %v282, 1
    %v295 = vrot.slane %v283, 1
    %v296 = vsel %vm141, %v294, %v295
    %v297 = vrot.slane %v284, 1
    %v298 = vsel %vm141, %v295, %v297
    %v299 = vrot.slane %v285, 1
    %v300 = vrot.slane %v286, 1
    %v301 = vsel %vm141, %v299, %v300
    %v302 = vrot.slane %v287, 1
    %v303 = vsel %vm141, %v300, %v302
    %304 = vrot.lane.b32.xlu0 %v296, 127
    %v305 = vpop.permute.xlu0 %304
    %306 = vrot.lane.b32.xlu0 %v298, 127
    %v307 = vpop.permute.xlu0 %306
    %308 = vrot.lane.b32.xlu0 %v301, 127
    %v309 = vpop.permute.xlu0 %308
    %310 = vrot.lane.b32.xlu0 %v303, 127
    %v311 = vpop.permute.xlu0 %310
    %v316 = vadd.f32 %v277, %v305
    %v317 = vadd.f32 %v278, %v307
    %v318 = vadd.f32 %v279, %v309
    %v319 = vadd.f32 %v280, %v311
    %v320 = vstv %s105
    %v321 = vmul.f32 %v90, %v320
    %v322 = vmul.f32 %v80, %v320
    %v323 = vmul.f32 %v92, %v320
    %v324 = vmul.f32 %v91, %v320
    %v325 = vmul.f32 %v83, %v320
    %v326 = vmul.f32 %v93, %v320
    %v333 = vrot.slane %v321, 2
    %v334 = vrot.slane %v322, 2
    %v335 = vsel %vm173, %v333, %v334
    %v336 = vrot.slane %v323, 2
    %v337 = vsel %vm173, %v334, %v336
    %v338 = vrot.slane %v324, 2
    %v339 = vrot.slane %v325, 2
    %v340 = vsel %vm173, %v338, %v339
    %v341 = vrot.slane %v326, 2
    %v342 = vsel %vm173, %v339, %v341
    %343 = vrot.lane.b32.xlu0 %v335, 127
    %v344 = vpop.permute.xlu0 %343
    %345 = vrot.lane.b32.xlu0 %v337, 127
    %v346 = vpop.permute.xlu0 %345
    %347 = vrot.lane.b32.xlu0 %v340, 127
    %v348 = vpop.permute.xlu0 %347
    %349 = vrot.lane.b32.xlu0 %v342, 127
    %v350 = vpop.permute.xlu0 %349
    %v355 = vadd.f32 %v316, %v344
    %v356 = vadd.f32 %v317, %v346
    %v357 = vadd.f32 %v318, %v348
    %v358 = vadd.f32 %v319, %v350
    %v359 = vstv %s110
    %v360 = vmul.f32 %v90, %v359
    %v361 = vmul.f32 %v80, %v359
    %v362 = vmul.f32 %v92, %v359
    %v363 = vmul.f32 %v91, %v359
    %v364 = vmul.f32 %v83, %v359
    %v365 = vmul.f32 %v93, %v359
    %v372 = vrot.slane %v360, 3
    %v373 = vrot.slane %v361, 3
    %v374 = vsel %vm205, %v372, %v373
    %v375 = vrot.slane %v362, 3
    %v376 = vsel %vm205, %v373, %v375
    %v377 = vrot.slane %v363, 3
    %v378 = vrot.slane %v364, 3
    %v379 = vsel %vm205, %v377, %v378
    %v380 = vrot.slane %v365, 3
    %v381 = vsel %vm205, %v378, %v380
    %382 = vrot.lane.b32.xlu0 %v374, 127
    %v383 = vpop.permute.xlu0 %382
    %384 = vrot.lane.b32.xlu0 %v376, 127
    %v385 = vpop.permute.xlu0 %384
    %386 = vrot.lane.b32.xlu0 %v379, 127
    %v387 = vpop.permute.xlu0 %386
    %388 = vrot.lane.b32.xlu0 %v381, 127
    %v389 = vpop.permute.xlu0 %388
    %v394 = vadd.f32 %v355, %v383
    %v395 = vadd.f32 %v356, %v385
    %v396 = vadd.f32 %v357, %v387
    %v397 = vadd.f32 %v358, %v389
    %v398 = vstv %s115
    %v399 = vmul.f32 %v90, %v398
    %v400 = vmul.f32 %v80, %v398
    %v401 = vmul.f32 %v92, %v398
    %v402 = vmul.f32 %v91, %v398
    %v403 = vmul.f32 %v83, %v398
    %v404 = vmul.f32 %v93, %v398
    %v411 = vrot.slane %v399, 4
    %v412 = vrot.slane %v400, 4
    %v413 = vsel %vm237, %v411, %v412
    %v414 = vrot.slane %v401, 4
    %v415 = vsel %vm237, %v412, %v414
    %v416 = vrot.slane %v402, 4
    %v417 = vrot.slane %v403, 4
    %v418 = vsel %vm237, %v416, %v417
    %v419 = vrot.slane %v404, 4
    %v420 = vsel %vm237, %v417, %v419
    %421 = vrot.lane.b32.xlu0 %v413, 127
    %v422 = vpop.permute.xlu0 %421
    %423 = vrot.lane.b32.xlu0 %v415, 127
    %v424 = vpop.permute.xlu0 %423
    %425 = vrot.lane.b32.xlu0 %v418, 127
    %v426 = vpop.permute.xlu0 %425
    %427 = vrot.lane.b32.xlu0 %v420, 127
    %v428 = vpop.permute.xlu0 %427
    %v433 = vadd.f32 %v394, %v422
    %v434 = vadd.f32 %v395, %v424
    %v435 = vadd.f32 %v396, %v426
    %v436 = vadd.f32 %v397, %v428
    %v437 = vstv %s96
    %v438 = vmul.f32 %v90, %v437
    %v439 = vmul.f32 %v80, %v437
    %v440 = vmul.f32 %v91, %v437
    %v441 = vmul.f32 %v83, %v437
    %446 = vrot.lane.b32.xlu0 %v438, 126
    %v447 = vpop.permute.xlu0 %446
    %448 = vrot.lane.b32.xlu0 %v439, 126
    %v449 = vpop.permute.xlu0 %448
    %450 = vrot.lane.b32.xlu0 %v440, 126
    %v451 = vpop.permute.xlu0 %450
    %452 = vrot.lane.b32.xlu0 %v441, 126
    %v453 = vpop.permute.xlu0 %452
    %v458 = vadd.f32 %v433, %v447
    %v459 = vadd.f32 %v434, %v449
    %v460 = vadd.f32 %v435, %v451
    %v461 = vadd.f32 %v436, %v453
    %v462 = vstv %s101
    %v463 = vmul.f32 %v90, %v462
    %v464 = vmul.f32 %v80, %v462
    %v465 = vmul.f32 %v92, %v462
    %v466 = vmul.f32 %v91, %v462
    %v467 = vmul.f32 %v83, %v462
    %v468 = vmul.f32 %v93, %v462
    %v475 = vrot.slane %v463, 1
    %v476 = vrot.slane %v464, 1
    %v477 = vsel %vm141, %v475, %v476
    %v478 = vrot.slane %v465, 1
    %v479 = vsel %vm141, %v476, %v478
    %v480 = vrot.slane %v466, 1
    %v481 = vrot.slane %v467, 1
    %v482 = vsel %vm141, %v480, %v481
    %v483 = vrot.slane %v468, 1
    %v484 = vsel %vm141, %v481, %v483
    %485 = vrot.lane.b32.xlu0 %v477, 126
    %v486 = vpop.permute.xlu0 %485
    %487 = vrot.lane.b32.xlu0 %v479, 126
    %v488 = vpop.permute.xlu0 %487
    %489 = vrot.lane.b32.xlu0 %v482, 126
    %v490 = vpop.permute.xlu0 %489
    %491 = vrot.lane.b32.xlu0 %v484, 126
    %v492 = vpop.permute.xlu0 %491
    %v497 = vadd.f32 %v458, %v486
    %v498 = vadd.f32 %v459, %v488
    %v499 = vadd.f32 %v460, %v490
    %v500 = vadd.f32 %v461, %v492
    %v501 = vstv %s106
    %v502 = vmul.f32 %v90, %v501
    %v503 = vmul.f32 %v80, %v501
    %v504 = vmul.f32 %v92, %v501
    %v505 = vmul.f32 %v91, %v501
    %v506 = vmul.f32 %v83, %v501
    %v507 = vmul.f32 %v93, %v501
    %v514 = vrot.slane %v502, 2
    %v515 = vrot.slane %v503, 2
    %v516 = vsel %vm173, %v514, %v515
    %v517 = vrot.slane %v504, 2
    %v518 = vsel %vm173, %v515, %v517
    %v519 = vrot.slane %v505, 2
    %v520 = vrot.slane %v506, 2
    %v521 = vsel %vm173, %v519, %v520
    %v522 = vrot.slane %v507, 2
    %v523 = vsel %vm173, %v520, %v522
    %524 = vrot.lane.b32.xlu0 %v516, 126
    %v525 = vpop.permute.xlu0 %524
    %526 = vrot.lane.b32.xlu0 %v518, 126
    %v527 = vpop.permute.xlu0 %526
    %528 = vrot.lane.b32.xlu0 %v521, 126
    %v529 = vpop.permute.xlu0 %528
    %530 = vrot.lane.b32.xlu0 %v523, 126
    %v531 = vpop.permute.xlu0 %530
    %v536 = vadd.f32 %v497, %v525
    %v537 = vadd.f32 %v498, %v527
    %v538 = vadd.f32 %v499, %v529
    %v539 = vadd.f32 %v500, %v531
    %v540 = vstv %s111
    %v541 = vmul.f32 %v90, %v540
    %v542 = vmul.f32 %v80, %v540
    %v543 = vmul.f32 %v92, %v540
    %v544 = vmul.f32 %v91, %v540
    %v545 = vmul.f32 %v83, %v540
    %v546 = vmul.f32 %v93, %v540
    %v553 = vrot.slane %v541, 3
    %v554 = vrot.slane %v542, 3
    %v555 = vsel %vm205, %v553, %v554
    %v556 = vrot.slane %v543, 3
    %v557 = vsel %vm205, %v554, %v556
    %v558 = vrot.slane %v544, 3
    %v559 = vrot.slane %v545, 3
    %v560 = vsel %vm205, %v558, %v559
    %v561 = vrot.slane %v546, 3
    %v562 = vsel %vm205, %v559, %v561
    %563 = vrot.lane.b32.xlu0 %v555, 126
    %v564 = vpop.permute.xlu0 %563
    %565 = vrot.lane.b32.xlu0 %v557, 126
    %v566 = vpop.permute.xlu0 %565
    %567 = vrot.lane.b32.xlu0 %v560, 126
    %v568 = vpop.permute.xlu0 %567
    %569 = vrot.lane.b32.xlu0 %v562, 126
    %v570 = vpop.permute.xlu0 %569
    %v575 = vadd.f32 %v536, %v564
    %v576 = vadd.f32 %v537, %v566
    %v577 = vadd.f32 %v538, %v568
    %v578 = vadd.f32 %v539, %v570
    %v579 = vstv %s116
    %v580 = vmul.f32 %v90, %v579
    %v581 = vmul.f32 %v80, %v579
    %v582 = vmul.f32 %v92, %v579
    %v583 = vmul.f32 %v91, %v579
    %v584 = vmul.f32 %v83, %v579
    %v585 = vmul.f32 %v93, %v579
    %v592 = vrot.slane %v580, 4
    %v593 = vrot.slane %v581, 4
    %v594 = vsel %vm237, %v592, %v593
    %v595 = vrot.slane %v582, 4
    %v596 = vsel %vm237, %v593, %v595
    %v597 = vrot.slane %v583, 4
    %v598 = vrot.slane %v584, 4
    %v599 = vsel %vm237, %v597, %v598
    %v600 = vrot.slane %v585, 4
    %v601 = vsel %vm237, %v598, %v600
    %602 = vrot.lane.b32.xlu0 %v594, 126
    %v603 = vpop.permute.xlu0 %602
    %604 = vrot.lane.b32.xlu0 %v596, 126
    %v605 = vpop.permute.xlu0 %604
    %606 = vrot.lane.b32.xlu0 %v599, 126
    %v607 = vpop.permute.xlu0 %606
    %608 = vrot.lane.b32.xlu0 %v601, 126
    %v609 = vpop.permute.xlu0 %608
    %v614 = vadd.f32 %v575, %v603
    %v615 = vadd.f32 %v576, %v605
    %v616 = vadd.f32 %v577, %v607
    %v617 = vadd.f32 %v578, %v609
    %v618 = vstv %s97
    %v619 = vmul.f32 %v90, %v618
    %v620 = vmul.f32 %v80, %v618
    %v621 = vmul.f32 %v91, %v618
    %v622 = vmul.f32 %v83, %v618
    %627 = vrot.lane.b32.xlu0 %v619, 125
    %v628 = vpop.permute.xlu0 %627
    %629 = vrot.lane.b32.xlu0 %v620, 125
    %v630 = vpop.permute.xlu0 %629
    %631 = vrot.lane.b32.xlu0 %v621, 125
    %v632 = vpop.permute.xlu0 %631
    %633 = vrot.lane.b32.xlu0 %v622, 125
    %v634 = vpop.permute.xlu0 %633
    %v639 = vadd.f32 %v614, %v628
    %v640 = vadd.f32 %v615, %v630
    %v641 = vadd.f32 %v616, %v632
    %v642 = vadd.f32 %v617, %v634
    %v643 = vstv %s102
    %v644 = vmul.f32 %v90, %v643
    %v645 = vmul.f32 %v80, %v643
    %v646 = vmul.f32 %v92, %v643
    %v647 = vmul.f32 %v91, %v643
    %v648 = vmul.f32 %v83, %v643
    %v649 = vmul.f32 %v93, %v643
    %v656 = vrot.slane %v644, 1
    %v657 = vrot.slane %v645, 1
    %v658 = vsel %vm141, %v656, %v657
    %v659 = vrot.slane %v646, 1
    %v660 = vsel %vm141, %v657, %v659
    %v661 = vrot.slane %v647, 1
    %v662 = vrot.slane %v648, 1
    %v663 = vsel %vm141, %v661, %v662
    %v664 = vrot.slane %v649, 1
    %v665 = vsel %vm141, %v662, %v664
    %666 = vrot.lane.b32.xlu0 %v658, 125
    %v667 = vpop.permute.xlu0 %666
    %668 = vrot.lane.b32.xlu0 %v660, 125
    %v669 = vpop.permute.xlu0 %668
    %670 = vrot.lane.b32.xlu0 %v663, 125
    %v671 = vpop.permute.xlu0 %670
    %672 = vrot.lane.b32.xlu0 %v665, 125
    %v673 = vpop.permute.xlu0 %672
    %v678 = vadd.f32 %v639, %v667
    %v679 = vadd.f32 %v640, %v669
    %v680 = vadd.f32 %v641, %v671
    %v681 = vadd.f32 %v642, %v673
    %v682 = vstv %s107
    %v683 = vmul.f32 %v90, %v682
    %v684 = vmul.f32 %v80, %v682
    %v685 = vmul.f32 %v92, %v682
    %v686 = vmul.f32 %v91, %v682
    %v687 = vmul.f32 %v83, %v682
    %v688 = vmul.f32 %v93, %v682
    %v695 = vrot.slane %v683, 2
    %v696 = vrot.slane %v684, 2
    %v697 = vsel %vm173, %v695, %v696
    %v698 = vrot.slane %v685, 2
    %v699 = vsel %vm173, %v696, %v698
    %v700 = vrot.slane %v686, 2
    %v701 = vrot.slane %v687, 2
    %v702 = vsel %vm173, %v700, %v701
    %v703 = vrot.slane %v688, 2
    %v704 = vsel %vm173, %v701, %v703
    %705 = vrot.lane.b32.xlu0 %v697, 125
    %v706 = vpop.permute.xlu0 %705
    %707 = vrot.lane.b32.xlu0 %v699, 125
    %v708 = vpop.permute.xlu0 %707
    %709 = vrot.lane.b32.xlu0 %v702, 125
    %v710 = vpop.permute.xlu0 %709
    %711 = vrot.lane.b32.xlu0 %v704, 125
    %v712 = vpop.permute.xlu0 %711
    %v717 = vadd.f32 %v678, %v706
    %v718 = vadd.f32 %v679, %v708
    %v719 = vadd.f32 %v680, %v710
    %v720 = vadd.f32 %v681, %v712
    %v721 = vstv %s112
    %v722 = vmul.f32 %v90, %v721
    %v723 = vmul.f32 %v80, %v721
    %v724 = vmul.f32 %v92, %v721
    %v725 = vmul.f32 %v91, %v721
    %v726 = vmul.f32 %v83, %v721
    %v727 = vmul.f32 %v93, %v721
    %v734 = vrot.slane %v722, 3
    %v735 = vrot.slane %v723, 3
    %v736 = vsel %vm205, %v734, %v735
    %v737 = vrot.slane %v724, 3
    %v738 = vsel %vm205, %v735, %v737
    %v739 = vrot.slane %v725, 3
    %v740 = vrot.slane %v726, 3
    %v741 = vsel %vm205, %v739, %v740
    %v742 = vrot.slane %v727, 3
    %v743 = vsel %vm205, %v740, %v742
    %744 = vrot.lane.b32.xlu0 %v736, 125
    %v745 = vpop.permute.xlu0 %744
    %746 = vrot.lane.b32.xlu0 %v738, 125
    %v747 = vpop.permute.xlu0 %746
    %748 = vrot.lane.b32.xlu0 %v741, 125
    %v749 = vpop.permute.xlu0 %748
    %750 = vrot.lane.b32.xlu0 %v743, 125
    %v751 = vpop.permute.xlu0 %750
    %v756 = vadd.f32 %v717, %v745
    %v757 = vadd.f32 %v718, %v747
    %v758 = vadd.f32 %v719, %v749
    %v759 = vadd.f32 %v720, %v751
    %v760 = vstv %s117
    %v761 = vmul.f32 %v90, %v760
    %v762 = vmul.f32 %v80, %v760
    %v763 = vmul.f32 %v92, %v760
    %v764 = vmul.f32 %v91, %v760
    %v765 = vmul.f32 %v83, %v760
    %v766 = vmul.f32 %v93, %v760
    %v773 = vrot.slane %v761, 4
    %v774 = vrot.slane %v762, 4
    %v775 = vsel %vm237, %v773, %v774
    %v776 = vrot.slane %v763, 4
    %v777 = vsel %vm237, %v774, %v776
    %v778 = vrot.slane %v764, 4
    %v779 = vrot.slane %v765, 4
    %v780 = vsel %vm237, %v778, %v779
    %v781 = vrot.slane %v766, 4
    %v782 = vsel %vm237, %v779, %v781
    %783 = vrot.lane.b32.xlu0 %v775, 125
    %v784 = vpop.permute.xlu0 %783
    %785 = vrot.lane.b32.xlu0 %v777, 125
    %v786 = vpop.permute.xlu0 %785
    %787 = vrot.lane.b32.xlu0 %v780, 125
    %v788 = vpop.permute.xlu0 %787
    %789 = vrot.lane.b32.xlu0 %v782, 125
    %v790 = vpop.permute.xlu0 %789
    %v795 = vadd.f32 %v756, %v784
    %v796 = vadd.f32 %v757, %v786
    %v797 = vadd.f32 %v758, %v788
    %v798 = vadd.f32 %v759, %v790
    %v799 = vstv %s98
    %v800 = vmul.f32 %v90, %v799
    %v801 = vmul.f32 %v80, %v799
    %v802 = vmul.f32 %v91, %v799
    %v803 = vmul.f32 %v83, %v799
    %808 = vrot.lane.b32.xlu0 %v800, 124
    %v809 = vpop.permute.xlu0 %808
    %810 = vrot.lane.b32.xlu0 %v801, 124
    %v811 = vpop.permute.xlu0 %810
    %812 = vrot.lane.b32.xlu0 %v802, 124
    %v813 = vpop.permute.xlu0 %812
    %814 = vrot.lane.b32.xlu0 %v803, 124
    %v815 = vpop.permute.xlu0 %814
    %v820 = vadd.f32 %v795, %v809
    %v821 = vadd.f32 %v796, %v811
    %v822 = vadd.f32 %v797, %v813
    %v823 = vadd.f32 %v798, %v815
    %v824 = vstv %s103
    %v825 = vmul.f32 %v90, %v824
    %v826 = vmul.f32 %v80, %v824
    %v827 = vmul.f32 %v92, %v824
    %v828 = vmul.f32 %v91, %v824
    %v829 = vmul.f32 %v83, %v824
    %v830 = vmul.f32 %v93, %v824
    %v837 = vrot.slane %v825, 1
    %v838 = vrot.slane %v826, 1
    %v839 = vsel %vm141, %v837, %v838
    %v840 = vrot.slane %v827, 1
    %v841 = vsel %vm141, %v838, %v840
    %v842 = vrot.slane %v828, 1
    %v843 = vrot.slane %v829, 1
    %v844 = vsel %vm141, %v842, %v843
    %v845 = vrot.slane %v830, 1
    %v846 = vsel %vm141, %v843, %v845
    %847 = vrot.lane.b32.xlu0 %v839, 124
    %v848 = vpop.permute.xlu0 %847
    %849 = vrot.lane.b32.xlu0 %v841, 124
    %v850 = vpop.permute.xlu0 %849
    %851 = vrot.lane.b32.xlu0 %v844, 124
    %v852 = vpop.permute.xlu0 %851
    %853 = vrot.lane.b32.xlu0 %v846, 124
    %v854 = vpop.permute.xlu0 %853
    %v859 = vadd.f32 %v820, %v848
    %v860 = vadd.f32 %v821, %v850
    %v861 = vadd.f32 %v822, %v852
    %v862 = vadd.f32 %v823, %v854
    %v863 = vstv %s108
    %v864 = vmul.f32 %v90, %v863
    %v865 = vmul.f32 %v80, %v863
    %v866 = vmul.f32 %v92, %v863
    %v867 = vmul.f32 %v91, %v863
    %v868 = vmul.f32 %v83, %v863
    %v869 = vmul.f32 %v93, %v863
    %v876 = vrot.slane %v864, 2
    %v877 = vrot.slane %v865, 2
    %v878 = vsel %vm173, %v876, %v877
    %v879 = vrot.slane %v866, 2
    %v880 = vsel %vm173, %v877, %v879
    %v881 = vrot.slane %v867, 2
    %v882 = vrot.slane %v868, 2
    %v883 = vsel %vm173, %v881, %v882
    %v884 = vrot.slane %v869, 2
    %v885 = vsel %vm173, %v882, %v884
    %886 = vrot.lane.b32.xlu0 %v878, 124
    %v887 = vpop.permute.xlu0 %886
    %888 = vrot.lane.b32.xlu0 %v880, 124
    %v889 = vpop.permute.xlu0 %888
    %890 = vrot.lane.b32.xlu0 %v883, 124
    %v891 = vpop.permute.xlu0 %890
    %892 = vrot.lane.b32.xlu0 %v885, 124
    %v893 = vpop.permute.xlu0 %892
    %v898 = vadd.f32 %v859, %v887
    %v899 = vadd.f32 %v860, %v889
    %v900 = vadd.f32 %v861, %v891
    %v901 = vadd.f32 %v862, %v893
    %v902 = vstv %s113
    %v903 = vmul.f32 %v90, %v902
    %v904 = vmul.f32 %v80, %v902
    %v905 = vmul.f32 %v92, %v902
    %v906 = vmul.f32 %v91, %v902
    %v907 = vmul.f32 %v83, %v902
    %v908 = vmul.f32 %v93, %v902
    %v915 = vrot.slane %v903, 3
    %v916 = vrot.slane %v904, 3
    %v917 = vsel %vm205, %v915, %v916
    %v918 = vrot.slane %v905, 3
    %v919 = vsel %vm205, %v916, %v918
    %v920 = vrot.slane %v906, 3
    %v921 = vrot.slane %v907, 3
    %v922 = vsel %vm205, %v920, %v921
    %v923 = vrot.slane %v908, 3
    %v924 = vsel %vm205, %v921, %v923
    %925 = vrot.lane.b32.xlu0 %v917, 124
    %v926 = vpop.permute.xlu0 %925
    %927 = vrot.lane.b32.xlu0 %v919, 124
    %v928 = vpop.permute.xlu0 %927
    %929 = vrot.lane.b32.xlu0 %v922, 124
    %v930 = vpop.permute.xlu0 %929
    %931 = vrot.lane.b32.xlu0 %v924, 124
    %v932 = vpop.permute.xlu0 %931
    %v937 = vadd.f32 %v898, %v926
    %v938 = vadd.f32 %v899, %v928
    %v939 = vadd.f32 %v900, %v930
    %v940 = vadd.f32 %v901, %v932
    %v941 = vstv %s118
    %v942 = vmul.f32 %v90, %v941
    %v943 = vmul.f32 %v80, %v941
    %v944 = vmul.f32 %v92, %v941
    %v945 = vmul.f32 %v91, %v941
    %v946 = vmul.f32 %v83, %v941
    %v947 = vmul.f32 %v93, %v941
    %v954 = vrot.slane %v942, 4
    %v955 = vrot.slane %v943, 4
    %v956 = vsel %vm237, %v954, %v955
    %v957 = vrot.slane %v944, 4
    %v958 = vsel %vm237, %v955, %v957
    %v959 = vrot.slane %v945, 4
    %v960 = vrot.slane %v946, 4
    %v961 = vsel %vm237, %v959, %v960
    %v962 = vrot.slane %v947, 4
    %v963 = vsel %vm237, %v960, %v962
    %964 = vrot.lane.b32.xlu0 %v956, 124
    %v965 = vpop.permute.xlu0 %964
    %966 = vrot.lane.b32.xlu0 %v958, 124
    %v967 = vpop.permute.xlu0 %966
    %968 = vrot.lane.b32.xlu0 %v961, 124
    %v969 = vpop.permute.xlu0 %968
    %970 = vrot.lane.b32.xlu0 %v963, 124
    %v971 = vpop.permute.xlu0 %970
    %v976 = vadd.f32 %v937, %v965
    %v977 = vadd.f32 %v938, %v967
    %v978 = vadd.f32 %v939, %v969
    %v979 = vadd.f32 %v940, %v971
    %s980 = sld [smem:[#allocation2]]
    %v981 = vstv %s980
    %v982 = vadd.f32 %v976, %v981
    %v983 = vadd.f32 %v977, %v981
    %v984 = vadd.f32 %v978, %v981
    %v985 = vadd.f32 %v979, %v981
    %v986 = vsub.f32 0.0, %v982
    %v987 = vsub.f32 0.0, %v983
    %v988 = vsub.f32 0.0, %v984
    %v989 = vsub.f32 0.0, %v985
    %v990 = vmul.f32 %v986, 1.442695
    %v991 = vpow.pop %v990
    %v992 = vmul.f32 %v987, 1.442695
    %v993 = vpow.pop %v992
    %v994 = vmul.f32 %v988, 1.442695
    %v995 = vpow.pop %v994
    %v996 = vmul.f32 %v989, 1.442695
    %v997 = vpow.pop %v996
    %v998 = vadd.f32 %v991, 1.0
    %v999 = vadd.f32 %v993, 1.0
    %v1000 = vadd.f32 %v995, 1.0
    %v1001 = vadd.f32 %v997, 1.0
    %v1002 = vrcp.pop %v998
    %v1003 = vmul.f32 1.0, %v1002
    %v1004 = vrcp.pop %v999
    %v1005 = vmul.f32 1.0, %v1004
    %v1006 = vrcp.pop %v1000
    %v1007 = vmul.f32 1.0, %v1006
    %v1008 = vrcp.pop %v1001
    %v1009 = vmul.f32 1.0, %v1008
    %vm1010 = vcmask 130048
    %1011 = vst.msk [vmem:[#allocation8] sm:$0xff] %vm1010, %v1003
    %1012 = vst.msk [vmem:[#allocation8 + $0x8] sm:$0xff] %vm1010, %v1005
    %1013 = vst.msk [vmem:[#allocation8 + $0x10] sm:$0xff] %vm1010, %v1007
    %1014 = vst.msk [vmem:[#allocation8 + $0x18] sm:$0xff] %vm1010, %v1009
    // Predicated region
    $region22: #{conv_transpose_sigmoid.1} parent=1 // pred_check
      _
    $region23: #{conv_transpose_sigmoid.1} parent=1 // pred_check_branch
      %1016 = sbr.rel (0) target = $region25
    $region24: #{conv_transpose_sigmoid.1} parent=1 // pred_region
      %s1018 = ssub.s32 512, 512
      %1019 = vsyncadd [#allocation5], %s1018
      %s1020 = sshll.u32 [#allocation8], 4
      %s1021 = int_to_ptr.vmem [resolvable:$true] %s1020
      %1026 = dma.vmem_to_hbm [thread:$0]  %s1021, 512, %s3, [#allocation5], 128, 128, 8
    $region25: #{conv_transpose_sigmoid.1} parent=1 // pred_fallthru
      _
    // Predicated region
    $region26: #{conv_transpose_sigmoid.1} parent=1 // pred_check
      _
    $region27: #{conv_transpose_sigmoid.1} parent=1 // pred_check_branch
      %1028 = sbr.rel (0) target = $region29
    $region28: #{conv_transpose_sigmoid.1} parent=1 // pred_region
      %1029 = dma.done [#allocation5], 512
    $region29: #{conv_transpose_sigmoid.1} parent=1 // pred_fallthru
      _
    %1030 = vsyncpa [#allocation4], 1
    %1031 = vsyncpa [#allocation5], 1
    %1032 = vsyncpa [#allocation6], 1

</llo_original>
